<compile_context>
chip_gen: v5e
topology: v5e:2x2
jax: 0.10.0
libtpu: 0.0.40
codegen_flags: <defaults>
</compile_context>

<pallas_src>
import jax
import jax.numpy as jnp
from jax.experimental import pallas as pl
from jax.experimental.pallas import tpu as pltpu

LANE = 128
SUBLANE = 8


def _round_up(n, m):
    return ((n + m - 1) // m) * m


def _pad2(a, rows, cols):
    r, c = a.shape
    return jnp.pad(a, ((0, rows - r), (0, cols - c)))


def _weight_spec(shape):
    # Weights/biases: full-array block, same block index for every grid step
    # -> single DMA, VMEM-resident across the batch grid.
    return pl.BlockSpec(shape, lambda i: (0, 0))


# ----------------------------------------------------------------------------
# Kernels
# ----------------------------------------------------------------------------

def vae_forward_kernel(x_ref, eps_ref,
                       ew0_ref, eb0_ref, ew1_ref, eb1_ref,
                       dw0_ref, db0_ref, dw1_ref, db1_ref,
                       out_ref):
    lat_p = eb1_ref.shape[1] // 2      # padded latent width (multiple of 128)
    in_p = db1_ref.shape[1]            # padded in_dim width (multiple of 128)

    # encoder: Linear -> ReLU -> fused (mu | log_var) head (single MXU push)
    h = jnp.dot(x_ref[...], ew0_ref[...],
                preferred_element_type=jnp.float32) + eb0_ref[...]
    h = jnp.maximum(h, 0.0)
    head = jnp.dot(h.astype(jnp.bfloat16), ew1_ref[...],
                   preferred_element_type=jnp.float32) + eb1_ref[...]
    mu = head[:, :lat_p]               # 128-aligned static slices
    log_var = head[:, lat_p:]

    # reparameterization (f32): z = eps * exp(0.5 * log_var) + mu
    sigma = jnp.exp(0.5 * log_var)
    z = eps_ref[...] * sigma + mu

    # decoder: Linear -> ReLU -> Linear (raw logits on the x-path)
    d = jnp.dot(z.astype(jnp.bfloat16), dw0_ref[...],
                preferred_element_type=jnp.float32) + db0_ref[...]
    d = jnp.maximum(d, 0.0)
    logits = jnp.dot(d.astype(jnp.bfloat16), dw1_ref[...],
                     preferred_element_type=jnp.float32) + db1_ref[...]

    # single lane-dense output slab: [ logits | mu | log_var ]
    out_ref[:, :in_p] = logits
    out_ref[:, in_p:in_p + lat_p] = mu
    out_ref[:, in_p + lat_p:] = log_var


def vae_decode_kernel(z_ref, dw0_ref, db0_ref, dw1_ref, db1_ref, p_ref):
    # forward(z=...) path: p = sigmoid(dec(z))
    d = jnp.dot(z_ref[...], dw0_ref[...],
                preferred_element_type=jnp.float32) + db0_ref[...]
    d = jnp.maximum(d, 0.0)
    logits = jnp.dot(d.astype(jnp.bfloat16), dw1_ref[...],
                     preferred_element_type=jnp.float32) + db1_ref[...]
    p_ref[...] = jax.nn.sigmoid(logits)


# ----------------------------------------------------------------------------
# Parameters (synthetic, PyTorch-Linear-style init), padded + bf16 for the MXU
# ----------------------------------------------------------------------------

def make_params(key, in_dim, hid_dim, latent_dim):
    ks = jax.random.split(key, 8)

    def lin(kw, kb, fan_in, fan_out):
        s = 1.0 / jnp.sqrt(jnp.float32(fan_in))
        w = jax.random.uniform(kw, (fan_in, fan_out), jnp.float32, -s, s)
        b = jax.random.uniform(kb, (1, fan_out), jnp.float32, -s, s)
        return w, b

    ew0, eb0 = lin(ks[0], ks[1], in_dim, hid_dim)
    ew1, eb1 = lin(ks[2], ks[3], hid_dim, 2 * latent_dim)   # [mu | log_var]
    dw0, db0 = lin(ks[4], ks[5], latent_dim, hid_dim)
    dw1, db1 = lin(ks[6], ks[7], hid_dim, in_dim)

    in_p = _round_up(in_dim, LANE)
    hid_p = _round_up(hid_dim, LANE)
    lat_p = _round_up(latent_dim, LANE)

    # Fused head stays one matmul; each half padded to a full 128-lane section
    # so the kernel can split mu/log_var on 128-aligned slices.
    ew1_mu, ew1_lv = ew1[:, :latent_dim], ew1[:, latent_dim:]
    eb1_mu, eb1_lv = eb1[:, :latent_dim], eb1[:, latent_dim:]
    ew1_p = jnp.concatenate([_pad2(ew1_mu, hid_p, lat_p),
                             _pad2(ew1_lv, hid_p, lat_p)], axis=1)
    eb1_p = jnp.concatenate([_pad2(eb1_mu, 1, lat_p),
                             _pad2(eb1_lv, 1, lat_p)], axis=1)

    params = dict(
        ew0=_pad2(ew0, in_p, hid_p).astype(jnp.bfloat16),
        eb0=_pad2(eb0, 1, hid_p),                    # biases stay f32
        ew1=ew1_p.astype(jnp.bfloat16),
        eb1=eb1_p,
        dw0=_pad2(dw0, lat_p, hid_p).astype(jnp.bfloat16),
        db0=_pad2(db0, 1, hid_p),
        dw1=_pad2(dw1, hid_p, in_p).astype(jnp.bfloat16),
        db1=_pad2(db1, 1, in_p),
        in_dim=in_dim, hid_dim=hid_dim, latent_dim=latent_dim,
        # raw f32 weights kept only for the pure-JAX reference check
        _raw=dict(ew0=ew0, eb0=eb0, ew1=ew1, eb1=eb1,
                  dw0=dw0, db0=db0, dw1=dw1, db1=db1),
    )
    return params


# ----------------------------------------------------------------------------
# Wrappers
# ----------------------------------------------------------------------------

def branch_vae_forward(x, eps, params, *, batch_tile=128):
    """forward(x=x): returns (logits, mu, log_var)."""
    B, in_dim = x.shape
    latent_dim = params["latent_dim"]
    in_p = params["db1"].shape[1]
    lat_p = params["eb1"].shape[1] // 2
    f_out = in_p + 2 * lat_p

    tb = min(_round_up(B, SUBLANE), batch_tile)
    b_pad = _round_up(B, tb)

    x_p = jnp.zeros((b_pad, in_p), jnp.bfloat16)
    x_p = x_p.at[:B, :in_dim].set(x.astype(jnp.bfloat16))
    eps_p = jnp.zeros((b_pad, lat_p), jnp.float32)
    eps_p = eps_p.at[:B, :latent_dim].set(eps.astype(jnp.float32))

    weights = (params["ew0"], params["eb0"], params["ew1"], params["eb1"],
               params["dw0"], params["db0"], params["dw1"], params["db1"])

    out = pl.pallas_call(
        vae_forward_kernel,
        out_shape=jax.ShapeDtypeStruct((b_pad, f_out), jnp.float32),
        grid=(b_pad // tb,),
        in_specs=[pl.BlockSpec((tb, in_p), lambda i: (i, 0)),
                  pl.BlockSpec((tb, lat_p), lambda i: (i, 0))]
                 + [_weight_spec(w.shape) for w in weights],
        out_specs=pl.BlockSpec((tb, f_out), lambda i: (i, 0)),
        compiler_params=pltpu.CompilerParams(
            dimension_semantics=("parallel",)),
    )(x_p, eps_p, *weights)

    logits = out[:B, :in_dim]
    mu = out[:B, in_p:in_p + latent_dim]
    log_var = out[:B, in_p + lat_p:in_p + lat_p + latent_dim]
    return logits, mu, log_var


def branch_vae_decode(z, params, *, batch_tile=128):
    """forward(z=z): returns p = sigmoid(dec(z))."""
    B, latent_dim = z.shape
    in_dim = params["in_dim"]
    in_p = params["db1"].shape[1]
    lat_p = params["dw0"].shape[0]

    tb = min(_round_up(B, SUBLANE), batch_tile)
    b_pad = _round_up(B, tb)

    z_p = jnp.zeros((b_pad, lat_p), jnp.bfloat16)
    z_p = z_p.at[:B, :latent_dim].set(z.astype(jnp.bfloat16))

    weights = (params["dw0"], params["db0"], params["dw1"], params["db1"])

    p = pl.pallas_call(
        vae_decode_kernel,
        out_shape=jax.ShapeDtypeStruct((b_pad, in_p), jnp.float32),
        grid=(b_pad // tb,),
        in_specs=[pl.BlockSpec((tb, lat_p), lambda i: (i, 0))]
                 + [_weight_spec(w.shape) for w in weights],
        out_specs=pl.BlockSpec((tb, in_p), lambda i: (i, 0)),
        compiler_params=pltpu.CompilerParams(
            dimension_semantics=("parallel",)),
    )(z_p, *weights)

    return p[:B, :in_dim]


def _reference_forward(x, eps, raw, latent_dim):
    h = jnp.maximum(x @ raw["ew0"] + raw["eb0"], 0.0)
    head = h @ raw["ew1"] + raw["eb1"]
    mu, log_var = head[:, :latent_dim], head[:, latent_dim:]
    z = eps * jnp.exp(0.5 * log_var) + mu
    d = jnp.maximum(z @ raw["dw0"] + raw["db0"], 0.0)
    logits = d @ raw["dw1"] + raw["db1"]
    return logits, mu, log_var


if __name__ == "__main__":
    # BranchVAE(in_dim=16, hid_dim=32, n_layers=2, latent_dim=8), batch=8.
    B, in_dim, hid_dim, latent_dim = 8, 16, 32, 8

    key = jax.random.PRNGKey(0)
    kx, keps, kz, kparams = jax.random.split(key, 4)

    params = make_params(kparams, in_dim, hid_dim, latent_dim)
    x = jax.random.normal(kx, (B, in_dim), jnp.float32)
    eps = jax.random.normal(keps, (B, latent_dim), jnp.float32)
    z_in = jax.random.normal(kz, (B, latent_dim), jnp.float32)

    logits, mu, log_var = branch_vae_forward(x, eps, params)
    p = branch_vae_decode(z_in, params)
    jax.block_until_ready((logits, mu, log_var, p))

    # shape / sanity checks
    assert logits.shape == (B, in_dim)
    assert mu.shape == (B, latent_dim) and log_var.shape == (B, latent_dim)
    assert p.shape == (B, in_dim)
    assert bool(jnp.all(jnp.isfinite(logits)))
    assert bool(jnp.all((p >= 0.0) & (p <= 1.0)))

    # numerical check vs pure-JAX f32 reference (bf16 MXU operands -> loose tol)
    r_logits, r_mu, r_lv = _reference_forward(x, eps, params["_raw"], latent_dim)
    assert float(jnp.max(jnp.abs(logits - r_logits))) < 0.15
    assert float(jnp.max(jnp.abs(mu - r_mu))) < 0.15
    assert float(jnp.max(jnp.abs(log_var - r_lv))) < 0.15

    print("KERNEL_OK")
</pallas_src>

<mosaic_0001>
module attributes {stable_mosaic.version = 11 : i64} {
  func.func @vae_forward_kernel(%arg0: i32, %arg1: memref<8x128xbf16, #tpu.memory_space<vmem>>, %arg2: memref<8x128xf32, #tpu.memory_space<vmem>>, %arg3: memref<128x128xbf16, #tpu.memory_space<vmem>>, %arg4: memref<1x128xf32, #tpu.memory_space<vmem>>, %arg5: memref<128x256xbf16, #tpu.memory_space<vmem>>, %arg6: memref<1x256xf32, #tpu.memory_space<vmem>>, %arg7: memref<128x128xbf16, #tpu.memory_space<vmem>>, %arg8: memref<1x128xf32, #tpu.memory_space<vmem>>, %arg9: memref<128x128xbf16, #tpu.memory_space<vmem>>, %arg10: memref<1x128xf32, #tpu.memory_space<vmem>>, %arg11: memref<8x384xf32, #tpu.memory_space<vmem>>) attributes {dimension_semantics = [#tpu.dimension_semantics<parallel>], iteration_bounds = array<i64: 1>, scalar_prefetch = 0 : i64, scratch_operands = 0 : i64, tpu.core_type = #tpu.core_type<tc>, window_params = [{transform_indices = @transform_0, window_bounds = array<i64: 8, 128>}, {transform_indices = @transform_1, window_bounds = array<i64: 8, 128>}, {pipeline_mode = #tpu.pipeline_mode<synchronous>, transform_indices = @transform_2, window_bounds = array<i64: 128, 128>}, {pipeline_mode = #tpu.pipeline_mode<synchronous>, transform_indices = @transform_3, window_bounds = array<i64: 1, 128>}, {pipeline_mode = #tpu.pipeline_mode<synchronous>, transform_indices = @transform_4, window_bounds = array<i64: 128, 256>}, {pipeline_mode = #tpu.pipeline_mode<synchronous>, transform_indices = @transform_5, window_bounds = array<i64: 1, 256>}, {pipeline_mode = #tpu.pipeline_mode<synchronous>, transform_indices = @transform_6, window_bounds = array<i64: 128, 128>}, {pipeline_mode = #tpu.pipeline_mode<synchronous>, transform_indices = @transform_7, window_bounds = array<i64: 1, 128>}, {pipeline_mode = #tpu.pipeline_mode<synchronous>, transform_indices = @transform_8, window_bounds = array<i64: 128, 128>}, {pipeline_mode = #tpu.pipeline_mode<synchronous>, transform_indices = @transform_9, window_bounds = array<i64: 1, 128>}, {transform_indices = @transform_10, window_bounds = array<i64: 8, 384>}]} {
    %c0 = arith.constant 0 : index
    %c0_0 = arith.constant 0 : index
    %0 = vector.load %arg1[%c0, %c0_0] : memref<8x128xbf16, #tpu.memory_space<vmem>>, vector<8x128xbf16>
    %c0_1 = arith.constant 0 : index
    %c0_2 = arith.constant 0 : index
    %1 = vector.load %arg3[%c0_1, %c0_2] : memref<128x128xbf16, #tpu.memory_space<vmem>>, vector<128x128xbf16>
    %cst = arith.constant dense<0.000000e+00> : vector<8x128xf32>
    %2 = tpu.matmul %0, %1, %cst {dimension_numbers = #tpu.dot_dimension_numbers<[1], [0], [0], [1], [0, 0, 1, 1], [], []>} : vector<8x128xbf16>, vector<128x128xbf16>, vector<8x128xf32> -> vector<8x128xf32>
    %c0_3 = arith.constant 0 : index
    %c0_4 = arith.constant 0 : index
    %3 = vector.load %arg4[%c0_3, %c0_4] : memref<1x128xf32, #tpu.memory_space<vmem>>, vector<1x128xf32>
    %4 = vector.broadcast %3 : vector<1x128xf32> to vector<8x128xf32>
    %5 = arith.addf %2, %4 : vector<8x128xf32>
    %cst_5 = arith.constant 0.000000e+00 : f32
    %6 = vector.broadcast %cst_5 : f32 to vector<8x128xf32>
    %7 = arith.maximumf %5, %6 : vector<8x128xf32>
    %8 = arith.truncf %7 : vector<8x128xf32> to vector<8x128xbf16>
    %c0_6 = arith.constant 0 : index
    %c0_7 = arith.constant 0 : index
    %9 = vector.load %arg5[%c0_6, %c0_7] : memref<128x256xbf16, #tpu.memory_space<vmem>>, vector<128x256xbf16>
    %cst_8 = arith.constant dense<0.000000e+00> : vector<8x256xf32>
    %10 = tpu.matmul %8, %9, %cst_8 {dimension_numbers = #tpu.dot_dimension_numbers<[1], [0], [0], [1], [0, 0, 1, 1], [], []>} : vector<8x128xbf16>, vector<128x256xbf16>, vector<8x256xf32> -> vector<8x256xf32>
    %c0_9 = arith.constant 0 : index
    %c0_10 = arith.constant 0 : index
    %11 = vector.load %arg6[%c0_9, %c0_10] : memref<1x256xf32, #tpu.memory_space<vmem>>, vector<1x256xf32>
    %12 = vector.broadcast %11 : vector<1x256xf32> to vector<8x256xf32>
    %13 = arith.addf %10, %12 : vector<8x256xf32>
    %14 = vector.extract_strided_slice %13 {offsets = [0, 0], sizes = [8, 128], strides = [1, 1]} : vector<8x256xf32> to vector<8x128xf32>
    %15 = vector.extract_strided_slice %13 {offsets = [0, 128], sizes = [8, 128], strides = [1, 1]} : vector<8x256xf32> to vector<8x128xf32>
    %cst_11 = arith.constant 5.000000e-01 : f32
    %16 = vector.broadcast %cst_11 : f32 to vector<8x128xf32>
    %17 = arith.mulf %16, %15 : vector<8x128xf32>
    %18 = math.exp %17 : vector<8x128xf32>
    %c0_12 = arith.constant 0 : index
    %c0_13 = arith.constant 0 : index
    %19 = vector.load %arg2[%c0_12, %c0_13] : memref<8x128xf32, #tpu.memory_space<vmem>>, vector<8x128xf32>
    %20 = arith.mulf %19, %18 : vector<8x128xf32>
    %21 = arith.addf %20, %14 : vector<8x128xf32>
    %22 = arith.truncf %21 : vector<8x128xf32> to vector<8x128xbf16>
    %c0_14 = arith.constant 0 : index
    %c0_15 = arith.constant 0 : index
    %23 = vector.load %arg7[%c0_14, %c0_15] : memref<128x128xbf16, #tpu.memory_space<vmem>>, vector<128x128xbf16>
    %cst_16 = arith.constant dense<0.000000e+00> : vector<8x128xf32>
    %24 = tpu.matmul %22, %23, %cst_16 {dimension_numbers = #tpu.dot_dimension_numbers<[1], [0], [0], [1], [0, 0, 1, 1], [], []>} : vector<8x128xbf16>, vector<128x128xbf16>, vector<8x128xf32> -> vector<8x128xf32>
    %c0_17 = arith.constant 0 : index
    %c0_18 = arith.constant 0 : index
    %25 = vector.load %arg8[%c0_17, %c0_18] : memref<1x128xf32, #tpu.memory_space<vmem>>, vector<1x128xf32>
    %26 = vector.broadcast %25 : vector<1x128xf32> to vector<8x128xf32>
    %27 = arith.addf %24, %26 : vector<8x128xf32>
    %cst_19 = arith.constant 0.000000e+00 : f32
    %28 = vector.broadcast %cst_19 : f32 to vector<8x128xf32>
    %29 = arith.maximumf %27, %28 : vector<8x128xf32>
    %30 = arith.truncf %29 : vector<8x128xf32> to vector<8x128xbf16>
    %c0_20 = arith.constant 0 : index
    %c0_21 = arith.constant 0 : index
    %31 = vector.load %arg9[%c0_20, %c0_21] : memref<128x128xbf16, #tpu.memory_space<vmem>>, vector<128x128xbf16>
    %cst_22 = arith.constant dense<0.000000e+00> : vector<8x128xf32>
    %32 = tpu.matmul %30, %31, %cst_22 {dimension_numbers = #tpu.dot_dimension_numbers<[1], [0], [0], [1], [0, 0, 1, 1], [], []>} : vector<8x128xbf16>, vector<128x128xbf16>, vector<8x128xf32> -> vector<8x128xf32>
    %c0_23 = arith.constant 0 : index
    %c0_24 = arith.constant 0 : index
    %33 = vector.load %arg10[%c0_23, %c0_24] : memref<1x128xf32, #tpu.memory_space<vmem>>, vector<1x128xf32>
    %34 = vector.broadcast %33 : vector<1x128xf32> to vector<8x128xf32>
    %35 = arith.addf %32, %34 : vector<8x128xf32>
    %c0_25 = arith.constant 0 : index
    %c0_26 = arith.constant 0 : index
    %36 = vector.load %arg11[%c0_25, %c0_26] : memref<8x384xf32, #tpu.memory_space<vmem>>, vector<8x128xf32>
    tpu.vector_store %arg11[%c0_25, %c0_26], %35 {strides = array<i32>} : memref<8x384xf32, #tpu.memory_space<vmem>>, vector<8x128xf32>,
    %c0_27 = arith.constant 0 : index
    %c128 = arith.constant 128 : index
    %37 = vector.load %arg11[%c0_27, %c128] : memref<8x384xf32, #tpu.memory_space<vmem>>, vector<8x128xf32>
    tpu.vector_store %arg11[%c0_27, %c128], %14 {strides = array<i32>} : memref<8x384xf32, #tpu.memory_space<vmem>>, vector<8x128xf32>,
    %c0_28 = arith.constant 0 : index
    %c256 = arith.constant 256 : index
    %38 = vector.load %arg11[%c0_28, %c256] : memref<8x384xf32, #tpu.memory_space<vmem>>, vector<8x128xf32>
    tpu.vector_store %arg11[%c0_28, %c256], %15 {strides = array<i32>} : memref<8x384xf32, #tpu.memory_space<vmem>>, vector<8x128xf32>,
    return
  }
  func.func @transform_0(%arg0: i32) -> (i32, i32) {
    %c0_i32 = arith.constant 0 : i32
    %c0_i32_0 = arith.constant 0 : i32
    return %arg0, %c0_i32 : i32, i32
  }
  func.func @transform_1(%arg0: i32) -> (i32, i32) {
    %c0_i32 = arith.constant 0 : i32
    %c0_i32_0 = arith.constant 0 : i32
    return %arg0, %c0_i32 : i32, i32
  }
  func.func @transform_2(%arg0: i32) -> (i32, i32) {
    %c0_i32 = arith.constant 0 : i32
    %c0_i32_0 = arith.constant 0 : i32
    %c0_i32_1 = arith.constant 0 : i32
    return %c0_i32, %c0_i32_0 : i32, i32
  }
  func.func @transform_3(%arg0: i32) -> (i32, i32) {
    %c0_i32 = arith.constant 0 : i32
    %c0_i32_0 = arith.constant 0 : i32
    %c0_i32_1 = arith.constant 0 : i32
    return %c0_i32, %c0_i32_0 : i32, i32
  }
  func.func @transform_4(%arg0: i32) -> (i32, i32) {
    %c0_i32 = arith.constant 0 : i32
    %c0_i32_0 = arith.constant 0 : i32
    %c0_i32_1 = arith.constant 0 : i32
    return %c0_i32, %c0_i32_0 : i32, i32
  }
  func.func @transform_5(%arg0: i32) -> (i32, i32) {
    %c0_i32 = arith.constant 0 : i32
    %c0_i32_0 = arith.constant 0 : i32
    %c0_i32_1 = arith.constant 0 : i32
    return %c0_i32, %c0_i32_0 : i32, i32
  }
  func.func @transform_6(%arg0: i32) -> (i32, i32) {
    %c0_i32 = arith.constant 0 : i32
    %c0_i32_0 = arith.constant 0 : i32
    %c0_i32_1 = arith.constant 0 : i32
    return %c0_i32, %c0_i32_0 : i32, i32
  }
  func.func @transform_7(%arg0: i32) -> (i32, i32) {
    %c0_i32 = arith.constant 0 : i32
    %c0_i32_0 = arith.constant 0 : i32
    %c0_i32_1 = arith.constant 0 : i32
    return %c0_i32, %c0_i32_0 : i32, i32
  }
  func.func @transform_8(%arg0: i32) -> (i32, i32) {
    %c0_i32 = arith.constant 0 : i32
    %c0_i32_0 = arith.constant 0 : i32
    %c0_i32_1 = arith.constant 0 : i32
    return %c0_i32, %c0_i32_0 : i32, i32
  }
  func.func @transform_9(%arg0: i32) -> (i32, i32) {
    %c0_i32 = arith.constant 0 : i32
    %c0_i32_0 = arith.constant 0 : i32
    %c0_i32_1 = arith.constant 0 : i32
    return %c0_i32, %c0_i32_0 : i32, i32
  }
  func.func @transform_10(%arg0: i32) -> (i32, i32) {
    %c0_i32 = arith.constant 0 : i32
    %c0_i32_0 = arith.constant 0 : i32
    return %arg0, %c0_i32 : i32, i32
  }
}

</mosaic_0001>

<llo_original>
// kernel: tpu_custom_call.1
$region0: #{tpu_custom_call.1}
  #allocation0 [shape = 'u32[]', space=smem, size = 0x4, offset = 0x4, fixed_abs, tag = 'smem constant byte address 0x4 - core index']
  #allocation1 [shape = 'u32[72,128]{1,0:T(1,128)}', space=vmem, size = 0x9000, scoped, tag = 'internal scratch']
  %s0 = inlined_call_operand.hbm [shape: bf16[8,128], index: 0, kind: input, shape index: {}]
  %s1 = inlined_call_operand.hbm [shape: f32[8,128], index: 1, kind: input, shape index: {}]
  %s2 = inlined_call_operand.hbm [shape: bf16[128,128], index: 2, kind: input, shape index: {}]
  %s3 = inlined_call_operand.vmem [shape: f32[1,128], index: 3, kind: input, shape index: {}]
  %s4 = inlined_call_operand.hbm [shape: bf16[128,256], index: 4, kind: input, shape index: {}]
  %s5 = inlined_call_operand.vmem [shape: f32[1,256], index: 5, kind: input, shape index: {}]
  %s6 = inlined_call_operand.hbm [shape: bf16[128,128], index: 6, kind: input, shape index: {}]
  %s7 = inlined_call_operand.vmem [shape: f32[1,128], index: 7, kind: input, shape index: {}]
  %s8 = inlined_call_operand.hbm [shape: bf16[128,128], index: 8, kind: input, shape index: {}]
  %s9 = inlined_call_operand.vmem [shape: f32[1,128], index: 9, kind: input, shape index: {}]
  %s10 = inlined_call_operand.hbm [shape: f32[8,384], index: 10, kind: output, shape index: {}]
  %s11 = sld [smem:[#allocation0]]
  $region74: #{tpu_custom_call.1} parent=0
    _
  %s13 = ssub.s32 1, %s11
  %s14 = scalar_select 0, %s13, %s11
  $region1: #{tpu_custom_call.1} parent=0
    #allocation2 [shape = 'u8[2048]{0}', space=vmem, size = 0x800, scoped, tag = 'input window, operand 0, single buffered']
    #allocation3 [shape = 's32[1]{0}', space=sflag, size = 0x4, scoped, tag = 'scoped memory for tpu_custom_call.1']
    #allocation4 [shape = 's32[1]{0}', space=sflag, size = 0x4, scoped, tag = 'scoped memory for tpu_custom_call.1']
    #allocation5 [shape = 'u8[4096]{0}', space=vmem, size = 0x1000, scoped, tag = 'input window, operand 1, single buffered']
    #allocation6 [shape = 's32[1]{0}', space=sflag, size = 0x4, scoped, tag = 'scoped memory for tpu_custom_call.1']
    #allocation7 [shape = 'u8[32768]{0}', space=vmem, size = 0x8000, scoped, tag = 'input window, operand 2, single buffered']
    #allocation8 [shape = 'u8[65536]{0}', space=vmem, size = 0x10000, scoped, tag = 'input window, operand 4, single buffered']
    #allocation9 [shape = 's32[1]{0}', space=sflag, size = 0x4, scoped, tag = 'scoped memory for tpu_custom_call.1']
    #allocation10 [shape = 'u8[32768]{0}', space=vmem, size = 0x8000, scoped, tag = 'input window, operand 6, single buffered']
    #allocation11 [shape = 'u8[32768]{0}', space=vmem, size = 0x8000, scoped, tag = 'input window, operand 8, single buffered']
    #allocation12 [shape = 's32[1]{0}', space=sflag, size = 0x4, scoped, tag = 'scoped memory for tpu_custom_call.1']
    #allocation13 [shape = 'u8[12288]{0}', space=vmem, size = 0x3000, scoped, tag = 'output window, operand 0, single buffered']
    %15 = vsyncpa [#allocation3], 0
    %16 = vsyncpa [#allocation6], 0
    %17 = vsyncpa [#allocation9], 0
    %18 = vsyncpa [#allocation12], 0
    %19 = vsyncpa [#allocation4], 0
    // Predicated region
    $region2: #{tpu_custom_call.1} parent=1 // pred_check
      _
    $region3: #{tpu_custom_call.1} parent=1 // pred_check_branch
      %21 = sbr.rel (0) target = $region5
    $region4: #{tpu_custom_call.1} parent=1 // pred_region
      %23 = vsyncadd [#allocation3], 0
      %s25 = sshll.u32 %s0, 4
      %s26 = int_to_ptr.hbm [resolvable:$true] %s25
      %s27 = sshll.u32 [#allocation2], 4
      %s28 = int_to_ptr.vmem [resolvable:$true] %s27
      %30 = dma.hbm_to_vmem [thread:$0]  %s26, 64, %s28, [#allocation3]
    $region5: #{tpu_custom_call.1} parent=1 // pred_fallthru
      _
    // Predicated region
    $region6: #{tpu_custom_call.1} parent=1 // pred_check
      _
    $region7: #{tpu_custom_call.1} parent=1 // pred_check_branch
      %32 = sbr.rel (0) target = $region9
    $region8: #{tpu_custom_call.1} parent=1 // pred_region
      %34 = vsyncadd [#allocation6], 0
      %s36 = sshll.u32 %s1, 4
      %s37 = int_to_ptr.hbm [resolvable:$true] %s36
      %s38 = sshll.u32 [#allocation5], 4
      %s39 = int_to_ptr.vmem [resolvable:$true] %s38
      %41 = dma.hbm_to_vmem [thread:$0]  %s37, 128, %s39, [#allocation6]
    $region9: #{tpu_custom_call.1} parent=1 // pred_fallthru
      _
    // Predicated region
    $region10: #{tpu_custom_call.1} parent=1 // pred_check
      _
    $region11: #{tpu_custom_call.1} parent=1 // pred_check_branch
      %43 = sbr.rel (0) target = $region13
    $region12: #{tpu_custom_call.1} parent=1 // pred_region
      %45 = vsyncadd [#allocation6], 0
      %s46 = sshll.u32 %s2, 4
      %s47 = int_to_ptr.hbm [resolvable:$true] %s46
      %s48 = sshll.u32 [#allocation7], 4
      %s49 = int_to_ptr.vmem [resolvable:$true] %s48
      %54 = dma.hbm_to_vmem [thread:$0]  %s47, 1024, %s49, [#allocation6], 64, 64, 4
    $region13: #{tpu_custom_call.1} parent=1 // pred_fallthru
      _
    // Predicated region
    $region14: #{tpu_custom_call.1} parent=1 // pred_check
      _
    $region15: #{tpu_custom_call.1} parent=1 // pred_check_branch
      %56 = sbr.rel (0) target = $region17
    $region16: #{tpu_custom_call.1} parent=1 // pred_region
      _
    $region17: #{tpu_custom_call.1} parent=1 // pred_fallthru
      _
    // Predicated region
    $region18: #{tpu_custom_call.1} parent=1 // pred_check
      _
    $region19: #{tpu_custom_call.1} parent=1 // pred_check_branch
      %58 = sbr.rel (0) target = $region21
    $region20: #{tpu_custom_call.1} parent=1 // pred_region
      %60 = vsyncadd [#allocation9], 0
      %s61 = sshll.u32 %s4, 4
      %s62 = int_to_ptr.hbm [resolvable:$true] %s61
      %s63 = sshll.u32 [#allocation8], 4
      %s64 = int_to_ptr.vmem [resolvable:$true] %s63
      %69 = dma.hbm_to_vmem [thread:$0]  %s62, 2048, %s64, [#allocation9], 128, 128, 8
    $region21: #{tpu_custom_call.1} parent=1 // pred_fallthru
      _
    // Predicated region
    $region22: #{tpu_custom_call.1} parent=1 // pred_check
      _
    $region23: #{tpu_custom_call.1} parent=1 // pred_check_branch
      %71 = sbr.rel (0) target = $region25
    $region24: #{tpu_custom_call.1} parent=1 // pred_region
      _
    $region25: #{tpu_custom_call.1} parent=1 // pred_fallthru
      _
    // Predicated region
    $region26: #{tpu_custom_call.1} parent=1 // pred_check
      _
    $region27: #{tpu_custom_call.1} parent=1 // pred_check_branch
      %73 = sbr.rel (0) target = $region29
    $region28: #{tpu_custom_call.1} parent=1 // pred_region
      %75 = vsyncadd [#allocation9], 0
      %s76 = sshll.u32 %s6, 4
      %s77 = int_to_ptr.hbm [resolvable:$true] %s76
      %s78 = sshll.u32 [#allocation10], 4
      %s79 = int_to_ptr.vmem [resolvable:$true] %s78
      %84 = dma.hbm_to_vmem [thread:$0]  %s77, 1024, %s79, [#allocation9], 64, 64, 4
    $region29: #{tpu_custom_call.1} parent=1 // pred_fallthru
      _
    // Predicated region
    $region30: #{tpu_custom_call.1} parent=1 // pred_check
      _
    $region31: #{tpu_custom_call.1} parent=1 // pred_check_branch
      %86 = sbr.rel (0) target = $region33
    $region32: #{tpu_custom_call.1} parent=1 // pred_region
      _
    $region33: #{tpu_custom_call.1} parent=1 // pred_fallthru
      _
    // Predicated region
    $region34: #{tpu_custom_call.1} parent=1 // pred_check
      _
    $region35: #{tpu_custom_call.1} parent=1 // pred_check_branch
      %88 = sbr.rel (0) target = $region37
    $region36: #{tpu_custom_call.1} parent=1 // pred_region
      %90 = vsyncadd [#allocation12], 0
      %s91 = sshll.u32 %s8, 4
      %s92 = int_to_ptr.hbm [resolvable:$true] %s91
      %s93 = sshll.u32 [#allocation11], 4
      %s94 = int_to_ptr.vmem [resolvable:$true] %s93
      %99 = dma.hbm_to_vmem [thread:$0]  %s92, 1024, %s94, [#allocation12], 64, 64, 4
    $region37: #{tpu_custom_call.1} parent=1 // pred_fallthru
      _
    // Predicated region
    $region38: #{tpu_custom_call.1} parent=1 // pred_check
      _
    $region39: #{tpu_custom_call.1} parent=1 // pred_check_branch
      %101 = sbr.rel (0) target = $region41
    $region40: #{tpu_custom_call.1} parent=1 // pred_region
      _
    $region41: #{tpu_custom_call.1} parent=1 // pred_fallthru
      _
    // Predicated region
    $region42: #{tpu_custom_call.1} parent=1 // pred_check
      _
    $region43: #{tpu_custom_call.1} parent=1 // pred_check_branch
      %103 = sbr.rel (0) target = $region45
    $region44: #{tpu_custom_call.1} parent=1 // pred_region
      %105 = dma.done [#allocation3], 64
    $region45: #{tpu_custom_call.1} parent=1 // pred_fallthru
      _
    // Predicated region
    $region46: #{tpu_custom_call.1} parent=1 // pred_check
      _
    $region47: #{tpu_custom_call.1} parent=1 // pred_check_branch
      %107 = sbr.rel (0) target = $region49
    $region48: #{tpu_custom_call.1} parent=1 // pred_region
      %109 = dma.done [#allocation6], 128
    $region49: #{tpu_custom_call.1} parent=1 // pred_fallthru
      _
    // Predicated region
    $region50: #{tpu_custom_call.1} parent=1 // pred_check
      _
    $region51: #{tpu_custom_call.1} parent=1 // pred_check_branch
      %111 = sbr.rel (0) target = $region53
    $region52: #{tpu_custom_call.1} parent=1 // pred_region
      %113 = dma.done [#allocation6], 1024
    $region53: #{tpu_custom_call.1} parent=1 // pred_fallthru
      _
    // Predicated region
    $region54: #{tpu_custom_call.1} parent=1 // pred_check
      _
    $region55: #{tpu_custom_call.1} parent=1 // pred_check_branch
      %115 = sbr.rel (0) target = $region57
    $region56: #{tpu_custom_call.1} parent=1 // pred_region
      %117 = dma.done [#allocation9], 2048
    $region57: #{tpu_custom_call.1} parent=1 // pred_fallthru
      _
    // Predicated region
    $region58: #{tpu_custom_call.1} parent=1 // pred_check
      _
    $region59: #{tpu_custom_call.1} parent=1 // pred_check_branch
      %119 = sbr.rel (0) target = $region61
    $region60: #{tpu_custom_call.1} parent=1 // pred_region
      %121 = dma.done [#allocation9], 1024
    $region61: #{tpu_custom_call.1} parent=1 // pred_fallthru
      _
    // Predicated region
    $region62: #{tpu_custom_call.1} parent=1 // pred_check
      _
    $region63: #{tpu_custom_call.1} parent=1 // pred_check_branch
      %123 = sbr.rel (0) target = $region65
    $region64: #{tpu_custom_call.1} parent=1 // pred_region
      %125 = dma.done [#allocation12], 1024
    $region65: #{tpu_custom_call.1} parent=1 // pred_fallthru
      _
    %v126 = vld [vmem:[#allocation2] sm:$0xf]
    %v127 = vld [vmem:[#allocation7] sm:$0xf]
    %v128 = vld [vmem:[#allocation7 + $0x4] sm:$0xf]
    %v129 = vld [vmem:[#allocation7 + $0x8] sm:$0xf]
    %v130 = vld [vmem:[#allocation7 + $0xc] sm:$0xf]
    %v131 = vld [vmem:[#allocation7 + $0x10] sm:$0xf]
    %v132 = vld [vmem:[#allocation7 + $0x14] sm:$0xf]
    %v133 = vld [vmem:[#allocation7 + $0x18] sm:$0xf]
    %v134 = vld [vmem:[#allocation7 + $0x1c] sm:$0xf]
    %v135 = vld [vmem:[#allocation7 + $0x20] sm:$0xf]
    %v136 = vld [vmem:[#allocation7 + $0x24] sm:$0xf]
    %v137 = vld [vmem:[#allocation7 + $0x28] sm:$0xf]
    %v138 = vld [vmem:[#allocation7 + $0x2c] sm:$0xf]
    %v139 = vld [vmem:[#allocation7 + $0x30] sm:$0xf]
    %v140 = vld [vmem:[#allocation7 + $0x34] sm:$0xf]
    %v141 = vld [vmem:[#allocation7 + $0x38] sm:$0xf]
    %v142 = vld [vmem:[#allocation7 + $0x3c] sm:$0xf]
    %v143 = vld [vmem:[%s3] sm:$0x1]
    %v145 = vperm.slane %v143, 0
    %v163 = vunpack.c.l.b16 %v127
    %v164 = vunpack.c.l.b16 %v128
    %v165 = vunpack.c.l.b16 %v129
    %v166 = vunpack.c.l.b16 %v130
    %v167 = vunpack.c.l.b16 %v131
    %v168 = vunpack.c.l.b16 %v132
    %v169 = vunpack.c.l.b16 %v133
    %v170 = vunpack.c.l.b16 %v134
    %v171 = vunpack.c.l.b16 %v135
    %v172 = vunpack.c.l.b16 %v136
    %v173 = vunpack.c.l.b16 %v137
    %v174 = vunpack.c.l.b16 %v138
    %v175 = vunpack.c.l.b16 %v139
    %v176 = vunpack.c.l.b16 %v140
    %v177 = vunpack.c.l.b16 %v141
    %v178 = vunpack.c.l.b16 %v142
    %v179 = vpack.c.b16 %v164, %v163
    %v180 = vpack.c.b16 %v166, %v165
    %v181 = vpack.c.b16 %v168, %v167
    %v182 = vpack.c.b16 %v170, %v169
    %v183 = vpack.c.b16 %v172, %v171
    %v184 = vpack.c.b16 %v174, %v173
    %v185 = vpack.c.b16 %v176, %v175
    %v186 = vpack.c.b16 %v178, %v177
    %195 = vmatpush.bf16.msra.mxu0 %v186
    %196 = vmatpush.bf16.msra.mxu0 %v185
    %197 = vmatpush.bf16.msra.mxu0 %v184
    %198 = vmatpush.bf16.msra.mxu0 %v183
    %199 = vmatpush.bf16.msra.mxu0 %v182
    %200 = vmatpush.bf16.msra.mxu0 %v181
    %201 = vmatpush.bf16.msra.mxu0 %v180
    %202 = vmatpush.bf16.msra.mxu0 %v179
    %203 = vmatmul.bf16.gmra.mxu0 %v126
    %v204 = vpop.f32.mrf.mxu0
    %v205 = vadd.f32 %v145, %v204
    %v206 = vpop.f32.mrf.mxu0
    %207 = vdwg.mxu0
    %v208 = vmax.f32 %v205, 0.0
    %v209 = vpack.c.bf16 %v208, %v208
    %v210 = vld [vmem:[#allocation8] sm:$0xff]
    %v211 = vld [vmem:[#allocation8 + $0x8] sm:$0xff]
    %v212 = vld [vmem:[#allocation8 + $0x10] sm:$0xff]
    %v213 = vld [vmem:[#allocation8 + $0x18] sm:$0xff]
    %v214 = vld [vmem:[#allocation8 + $0x20] sm:$0xff]
    %v215 = vld [vmem:[#allocation8 + $0x28] sm:$0xff]
    %v216 = vld [vmem:[#allocation8 + $0x30] sm:$0xff]
    %v217 = vld [vmem:[#allocation8 + $0x38] sm:$0xff]
    %v218 = vld [vmem:[#allocation8 + $0x40] sm:$0xff]
    %v219 = vld [vmem:[#allocation8 + $0x48] sm:$0xff]
    %v220 = vld [vmem:[#allocation8 + $0x50] sm:$0xff]
    %v221 = vld [vmem:[#allocation8 + $0x58] sm:$0xff]
    %v222 = vld [vmem:[#allocation8 + $0x60] sm:$0xff]
    %v223 = vld [vmem:[#allocation8 + $0x68] sm:$0xff]
    %v224 = vld [vmem:[#allocation8 + $0x70] sm:$0xff]
    %v225 = vld [vmem:[#allocation8 + $0x78] sm:$0xff]
    %v226 = vld [vmem:[%s5] sm:$0x3]
    %v228 = vperm.slane %v226, 0
    %v229 = vperm.slane %v226, 1
    %v248 = vunpack.c.l.b16 %v210
    %v249 = vunpack.c.h.b16 %v210
    %v250 = vunpack.c.l.b16 %v211
    %v251 = vunpack.c.h.b16 %v211
    %v252 = vunpack.c.l.b16 %v212
    %v253 = vunpack.c.h.b16 %v212
    %v254 = vunpack.c.l.b16 %v213
    %v255 = vunpack.c.h.b16 %v213
    %v256 = vunpack.c.l.b16 %v214
    %v257 = vunpack.c.h.b16 %v214
    %v258 = vunpack.c.l.b16 %v215
    %v259 = vunpack.c.h.b16 %v215
    %v260 = vunpack.c.l.b16 %v216
    %v261 = vunpack.c.h.b16 %v216
    %v262 = vunpack.c.l.b16 %v217
    %v263 = vunpack.c.h.b16 %v217
    %v264 = vunpack.c.l.b16 %v218
    %v265 = vunpack.c.h.b16 %v218
    %v266 = vunpack.c.l.b16 %v219
    %v267 = vunpack.c.h.b16 %v219
    %v268 = vunpack.c.l.b16 %v220
    %v269 = vunpack.c.h.b16 %v220
    %v270 = vunpack.c.l.b16 %v221
    %v271 = vunpack.c.h.b16 %v221
    %v272 = vunpack.c.l.b16 %v222
    %v273 = vunpack.c.h.b16 %v222
    %v274 = vunpack.c.l.b16 %v223
    %v275 = vunpack.c.h.b16 %v223
    %v276 = vunpack.c.l.b16 %v224
    %v277 = vunpack.c.h.b16 %v224
    %v278 = vunpack.c.l.b16 %v225
    %v279 = vunpack.c.h.b16 %v225
    %v280 = vpack.c.b16 %v250, %v248
    %v281 = vpack.c.b16 %v251, %v249
    %v282 = vpack.c.b16 %v254, %v252
    %v283 = vpack.c.b16 %v255, %v253
    %v284 = vpack.c.b16 %v258, %v256
    %v285 = vpack.c.b16 %v259, %v257
    %v286 = vpack.c.b16 %v262, %v260
    %v287 = vpack.c.b16 %v263, %v261
    %v288 = vpack.c.b16 %v266, %v264
    %v289 = vpack.c.b16 %v267, %v265
    %v290 = vpack.c.b16 %v270, %v268
    %v291 = vpack.c.b16 %v271, %v269
    %v292 = vpack.c.b16 %v274, %v272
    %v293 = vpack.c.b16 %v275, %v273
    %v294 = vpack.c.b16 %v278, %v276
    %v295 = vpack.c.b16 %v279, %v277
    %312 = vmatpush.bf16.msra.mxu0 %v294
    %313 = vmatpush.bf16.msra.mxu0 %v292
    %314 = vmatpush.bf16.msra.mxu0 %v290
    %315 = vmatpush.bf16.msra.mxu0 %v288
    %316 = vmatpush.bf16.msra.mxu0 %v286
    %317 = vmatpush.bf16.msra.mxu0 %v284
    %318 = vmatpush.bf16.msra.mxu0 %v282
    %319 = vmatpush.bf16.msra.mxu0 %v280
    %320 = vmatmul.bf16.gmra.mxu0 %v209
    %v321 = vpop.f32.mrf.mxu0
    %v322 = vadd.f32 %v228, %v321
    %v323 = vpop.f32.mrf.mxu0
    %324 = vdwg.mxu0
    %325 = vmatpush.bf16.msra.mxu0 %v295
    %326 = vmatpush.bf16.msra.mxu0 %v293
    %327 = vmatpush.bf16.msra.mxu0 %v291
    %328 = vmatpush.bf16.msra.mxu0 %v289
    %329 = vmatpush.bf16.msra.mxu0 %v287
    %330 = vmatpush.bf16.msra.mxu0 %v285
    %331 = vmatpush.bf16.msra.mxu0 %v283
    %332 = vmatpush.bf16.msra.mxu0 %v281
    %333 = vmatmul.bf16.gmra.mxu0 %v209
    %v334 = vpop.f32.mrf.mxu0
    %v335 = vadd.f32 %v229, %v334
    %v336 = vpop.f32.mrf.mxu0
    %337 = vdwg.mxu0
    %v338 = vmul.f32 %v335, 0.5
    %v339 = vmul.f32 %v338, 1.442695
    %v340 = vpow.pop %v339
    %v341 = vld [vmem:[#allocation5] sm:$0xff]
    %v342 = vmul.f32 %v341, %v340
    %v343 = vadd.f32 %v342, %v322
    %v344 = vpack.c.bf16 %v343, %v343
    %v345 = vld [vmem:[#allocation10] sm:$0xf]
    %v346 = vld [vmem:[#allocation10 + $0x4] sm:$0xf]
    %v347 = vld [vmem:[#allocation10 + $0x8] sm:$0xf]
    %v348 = vld [vmem:[#allocation10 + $0xc] sm:$0xf]
    %v349 = vld [vmem:[#allocation10 + $0x10] sm:$0xf]
    %v350 = vld [vmem:[#allocation10 + $0x14] sm:$0xf]
    %v351 = vld [vmem:[#allocation10 + $0x18] sm:$0xf]
    %v352 = vld [vmem:[#allocation10 + $0x1c] sm:$0xf]
    %v353 = vld [vmem:[#allocation10 + $0x20] sm:$0xf]
    %v354 = vld [vmem:[#allocation10 + $0x24] sm:$0xf]
    %v355 = vld [vmem:[#allocation10 + $0x28] sm:$0xf]
    %v356 = vld [vmem:[#allocation10 + $0x2c] sm:$0xf]
    %v357 = vld [vmem:[#allocation10 + $0x30] sm:$0xf]
    %v358 = vld [vmem:[#allocation10 + $0x34] sm:$0xf]
    %v359 = vld [vmem:[#allocation10 + $0x38] sm:$0xf]
    %v360 = vld [vmem:[#allocation10 + $0x3c] sm:$0xf]
    %v361 = vld [vmem:[%s7] sm:$0x1]
    %v363 = vperm.slane %v361, 0
    %v381 = vunpack.c.l.b16 %v345
    %v382 = vunpack.c.l.b16 %v346
    %v383 = vunpack.c.l.b16 %v347
    %v384 = vunpack.c.l.b16 %v348
    %v385 = vunpack.c.l.b16 %v349
    %v386 = vunpack.c.l.b16 %v350
    %v387 = vunpack.c.l.b16 %v351
    %v388 = vunpack.c.l.b16 %v352
    %v389 = vunpack.c.l.b16 %v353
    %v390 = vunpack.c.l.b16 %v354
    %v391 = vunpack.c.l.b16 %v355
    %v392 = vunpack.c.l.b16 %v356
    %v393 = vunpack.c.l.b16 %v357
    %v394 = vunpack.c.l.b16 %v358
    %v395 = vunpack.c.l.b16 %v359
    %v396 = vunpack.c.l.b16 %v360
    %v397 = vpack.c.b16 %v382, %v381
    %v398 = vpack.c.b16 %v384, %v383
    %v399 = vpack.c.b16 %v386, %v385
    %v400 = vpack.c.b16 %v388, %v387
    %v401 = vpack.c.b16 %v390, %v389
    %v402 = vpack.c.b16 %v392, %v391
    %v403 = vpack.c.b16 %v394, %v393
    %v404 = vpack.c.b16 %v396, %v395
    %413 = vmatpush.bf16.msra.mxu0 %v404
    %414 = vmatpush.bf16.msra.mxu0 %v403
    %415 = vmatpush.bf16.msra.mxu0 %v402
    %416 = vmatpush.bf16.msra.mxu0 %v401
    %417 = vmatpush.bf16.msra.mxu0 %v400
    %418 = vmatpush.bf16.msra.mxu0 %v399
    %419 = vmatpush.bf16.msra.mxu0 %v398
    %420 = vmatpush.bf16.msra.mxu0 %v397
    %421 = vmatmul.bf16.gmra.mxu0 %v344
    %v422 = vpop.f32.mrf.mxu0
    %v423 = vadd.f32 %v363, %v422
    %v424 = vpop.f32.mrf.mxu0
    %425 = vdwg.mxu0
    %v426 = vmax.f32 %v423, 0.0
    %v427 = vpack.c.bf16 %v426, %v426
    %v428 = vld [vmem:[#allocation11] sm:$0xf]
    %v429 = vld [vmem:[#allocation11 + $0x4] sm:$0xf]
    %v430 = vld [vmem:[#allocation11 + $0x8] sm:$0xf]
    %v431 = vld [vmem:[#allocation11 + $0xc] sm:$0xf]
    %v432 = vld [vmem:[#allocation11 + $0x10] sm:$0xf]
    %v433 = vld [vmem:[#allocation11 + $0x14] sm:$0xf]
    %v434 = vld [vmem:[#allocation11 + $0x18] sm:$0xf]
    %v435 = vld [vmem:[#allocation11 + $0x1c] sm:$0xf]
    %v436 = vld [vmem:[#allocation11 + $0x20] sm:$0xf]
    %v437 = vld [vmem:[#allocation11 + $0x24] sm:$0xf]
    %v438 = vld [vmem:[#allocation11 + $0x28] sm:$0xf]
    %v439 = vld [vmem:[#allocation11 + $0x2c] sm:$0xf]
    %v440 = vld [vmem:[#allocation11 + $0x30] sm:$0xf]
    %v441 = vld [vmem:[#allocation11 + $0x34] sm:$0xf]
    %v442 = vld [vmem:[#allocation11 + $0x38] sm:$0xf]
    %v443 = vld [vmem:[#allocation11 + $0x3c] sm:$0xf]
    %v444 = vld [vmem:[%s9] sm:$0x1]
    %v446 = vperm.slane %v444, 0
    %v464 = vunpack.c.l.b16 %v428
    %v465 = vunpack.c.l.b16 %v429
    %v466 = vunpack.c.l.b16 %v430
    %v467 = vunpack.c.l.b16 %v431
    %v468 = vunpack.c.l.b16 %v432
    %v469 = vunpack.c.l.b16 %v433
    %v470 = vunpack.c.l.b16 %v434
    %v471 = vunpack.c.l.b16 %v435
    %v472 = vunpack.c.l.b16 %v436
    %v473 = vunpack.c.l.b16 %v437
    %v474 = vunpack.c.l.b16 %v438
    %v475 = vunpack.c.l.b16 %v439
    %v476 = vunpack.c.l.b16 %v440
    %v477 = vunpack.c.l.b16 %v441
    %v478 = vunpack.c.l.b16 %v442
    %v479 = vunpack.c.l.b16 %v443
    %v480 = vpack.c.b16 %v465, %v464
    %v481 = vpack.c.b16 %v467, %v466
    %v482 = vpack.c.b16 %v469, %v468
    %v483 = vpack.c.b16 %v471, %v470
    %v484 = vpack.c.b16 %v473, %v472
    %v485 = vpack.c.b16 %v475, %v474
    %v486 = vpack.c.b16 %v477, %v476
    %v487 = vpack.c.b16 %v479, %v478
    %496 = vmatpush.bf16.msra.mxu0 %v487
    %497 = vmatpush.bf16.msra.mxu0 %v486
    %498 = vmatpush.bf16.msra.mxu0 %v485
    %499 = vmatpush.bf16.msra.mxu0 %v484
    %500 = vmatpush.bf16.msra.mxu0 %v483
    %501 = vmatpush.bf16.msra.mxu0 %v482
    %502 = vmatpush.bf16.msra.mxu0 %v481
    %503 = vmatpush.bf16.msra.mxu0 %v480
    %504 = vmatmul.bf16.gmra.mxu0 %v427
    %v505 = vpop.f32.mrf.mxu0
    %v506 = vadd.f32 %v446, %v505
    %v507 = vpop.f32.mrf.mxu0
    %508 = vdwg.mxu0
    %509 = vst [vmem:[#allocation13] sm:$0xff] %v506
    %510 = vst [vmem:[#allocation13 + $0x8] sm:$0xff] %v322
    %511 = vst [vmem:[#allocation13 + $0x10] sm:$0xff] %v335
    // Predicated region
    $region66: #{tpu_custom_call.1} parent=1 // pred_check
      _
    $region67: #{tpu_custom_call.1} parent=1 // pred_check_branch
      %513 = sbr.rel (0) target = $region69
    $region68: #{tpu_custom_call.1} parent=1 // pred_region
      %515 = vsyncadd [#allocation4], 0
      %s517 = sshll.u32 [#allocation13], 4
      %s518 = int_to_ptr.vmem [resolvable:$true] %s517
      %s519 = sshll.u32 %s10, 4
      %s520 = int_to_ptr.hbm [resolvable:$true] %s519
      %522 = dma.vmem_to_hbm [thread:$0]  %s518, 384, %s520, [#allocation4]
    $region69: #{tpu_custom_call.1} parent=1 // pred_fallthru
      _
    // Predicated region
    $region70: #{tpu_custom_call.1} parent=1 // pred_check
      _
    $region71: #{tpu_custom_call.1} parent=1 // pred_check_branch
      %524 = sbr.rel (0) target = $region73
    $region72: #{tpu_custom_call.1} parent=1 // pred_region
      %526 = dma.done [#allocation4], 384
    $region73: #{tpu_custom_call.1} parent=1 // pred_fallthru
      _
    %527 = vsyncpa [#allocation3], 1
    %528 = vsyncpa [#allocation6], 1
    %529 = vsyncpa [#allocation9], 1
    %530 = vsyncpa [#allocation12], 1
    %531 = vsyncpa [#allocation4], 1

</llo_original>
